<compile_context>
chip_gen: v5e
topology: v5e:2x2
jax: 0.10.0
libtpu: 0.0.40
codegen_flags: <defaults>
</compile_context>

<pallas_src>
import jax
import jax.numpy as jnp
from jax.experimental import pallas as pl
from jax.experimental.pallas import tpu as pltpu

_LANE = 128
_NEG_BIG = -1e30  # padded-vertex bias: exp(-1e30 - m) == 0, drops out of softmax


def _round_up(x, m):
    return (x + m - 1) // m * m


# ---------------------------------------------------------------------------
# Kernel: Linear -> softmax -> vertex interpolation (+ folded reconstruction)
# ---------------------------------------------------------------------------
def _constraints_head_kernel(x_ref, w_ref, b_ref, v_ref, o_ref):
    # In-kernel bf16 cast of the activations (VPU), then bf16 MXU matmul with
    # f32 accumulation; bias add in f32.
    x_bf16 = x_ref[...].astype(jnp.bfloat16)
    logits = jnp.dot(x_bf16, w_ref[...],
                     preferred_element_type=jnp.float32) + b_ref[...]
    # ZeroNaNGradientsFn is identity in the forward pass.
    # Softmax numerator/denominator in f32 (no bf16 elementwise on v5e).
    m = jnp.max(logits, axis=-1, keepdims=True)
    e = jnp.exp(logits - m)                      # padded lanes: exp(-1e30) == 0
    s = jnp.sum(e, axis=-1, keepdims=True)
    # Deferred normalization: (e @ V_eff) * 1/s.  V_eff already folds the
    # per-concept "1 - sum(others)" reconstruction and is lane-padded, so the
    # output slab is lane-dense (unmasked vst).
    acc = jnp.dot(e.astype(jnp.bfloat16), v_ref[...],
                  preferred_element_type=jnp.float32)
    o_ref[...] = acc * pl.reciprocal(s, approx=True)


# ---------------------------------------------------------------------------
# One-time parameter preprocessing (padding / folding / bf16 cast)
# ---------------------------------------------------------------------------
def prepare_constraints_head_params(w, b, vertices, concepts):
    """Fold reconstruction into vertices, lane-pad V and D, cast MXU operands."""
    F, V = w.shape
    d_full = int(sum(concepts.values()))
    v_pad = _round_up(V, _LANE)
    d_pad = _round_up(d_full, _LANE)

    # Fold reconstruct_solution_from_constr_without_eq into the vertex matrix:
    # softmax weights sum to 1, so reconstructing after interpolation equals
    # interpolating reconstructed vertices (affine map commutes with convex comb).
    parts = []
    off = 0
    for n in concepts.values():
        g = vertices[:, off:off + n - 1]
        last = 1.0 - jnp.sum(g, axis=-1, keepdims=True)
        parts.append(jnp.concatenate([g, last], axis=-1))
        off += n - 1
    v_eff = jnp.concatenate(parts, axis=-1)                       # [V, d_full]

    w_p = jnp.zeros((F, v_pad), jnp.bfloat16).at[:, :V].set(
        w.astype(jnp.bfloat16))
    b_p = jnp.full((1, v_pad), _NEG_BIG, jnp.float32).at[:, :V].set(
        jnp.reshape(b, (1, V)).astype(jnp.float32))
    v_p = jnp.zeros((v_pad, d_pad), jnp.bfloat16).at[:V, :d_full].set(
        v_eff.astype(jnp.bfloat16))
    return {"w": w_p, "b": b_p, "v_eff": v_p, "d_full": d_full}


# ---------------------------------------------------------------------------
# Batch-tiled pallas_call wrapper
# ---------------------------------------------------------------------------
def constraints_head_core(x, w_p, b_p, v_p, *, block_b=512):
    """Returns the lane-padded [B, d_pad] probability slab (f32)."""
    B, F = x.shape
    v_pad = w_p.shape[1]
    d_pad = v_p.shape[1]

    # Batch tile: multiple of 8, capped at block_b.  Per-step VMEM
    # (2x f32 x-tile + resident W/bias/V_eff + f32 logits/out double-buffered)
    # stays far below the scoped VMEM default on v5e/v6e/v7x at these sizes.
    tb = min(block_b, _round_up(B, 8))
    b_padded = _round_up(B, tb)

    # Only materialize a padded copy when the batch is ragged; no wrapper-side
    # dtype cast (the bf16 cast happens inside the kernel).
    x_p = x if b_padded == B else jnp.pad(x, ((0, b_padded - B), (0, 0)))

    out = pl.pallas_call(
        _constraints_head_kernel,
        out_shape=jax.ShapeDtypeStruct((b_padded, d_pad), jnp.float32),
        grid=(b_padded // tb,),
        in_specs=[
            pl.BlockSpec((tb, F), lambda i: (i, 0)),        # embeddings (tiled)
            pl.BlockSpec((F, v_pad), lambda i: (0, 0)),     # weight (resident)
            pl.BlockSpec((1, v_pad), lambda i: (0, 0)),     # bias   (resident)
            pl.BlockSpec((v_pad, d_pad), lambda i: (0, 0)), # V_eff  (resident)
        ],
        out_specs=pl.BlockSpec((tb, d_pad), lambda i: (i, 0)),
        compiler_params=pltpu.CompilerParams(
            dimension_semantics=("parallel",)),             # megacore on v7x
    )(x_p, w_p, b_p, v_p)
    return out[:B]


def constraints_head_forward(embeddings, prepared, concepts):
    slab = constraints_head_core(
        embeddings, prepared["w"], prepared["b"], prepared["v_eff"])
    probas = slab[:, :prepared["d_full"]]
    out = {}
    shift = 0
    for name, n in concepts.items():
        out[name] = probas[:, shift:shift + n]
        shift += n
    return out


# ---------------------------------------------------------------------------
# Pure-JAX references
# ---------------------------------------------------------------------------
def _reconstruct(reduced, concepts):
    parts = []
    off = 0
    for n in concepts.values():
        g = reduced[:, off:off + n - 1]
        last = 1.0 - jnp.sum(g, axis=-1, keepdims=True)
        parts.append(jnp.concatenate([g, last], axis=-1))
        off += n - 1
    return jnp.concatenate(parts, axis=-1)


def _split(vec, concepts):
    out = {}
    shift = 0
    for name, n in concepts.items():
        out[name] = vec[:, shift:shift + n]
        shift += n
    return out


def _reference_forward_f32(x, w, b, vertices, concepts):
    """Original module semantics in full f32."""
    logits = x @ w + b
    p = jax.nn.softmax(logits, axis=-1)
    reduced = p @ vertices
    return _split(_reconstruct(reduced, concepts), concepts)


def _reference_forward_bf16(x, w, b, vertices, concepts):
    """Emulates the kernel's bf16-MXU / f32-accumulate precision path."""
    logits = jnp.dot(x.astype(jnp.bfloat16), w.astype(jnp.bfloat16),
                     preferred_element_type=jnp.float32) + b
    m = jnp.max(logits, axis=-1, keepdims=True)
    e = jnp.exp(logits - m)
    s = jnp.sum(e, axis=-1, keepdims=True)
    reduced = jnp.dot(e.astype(jnp.bfloat16), vertices.astype(jnp.bfloat16),
                      preferred_element_type=jnp.float32) / s
    return _split(_reconstruct(reduced, concepts), concepts)


if __name__ == "__main__":
    # Synthetic deterministic setup (no checkpoint load).
    concepts = {"color": 3, "shape": 4, "size": 2}            # outcomes per concept
    outcomes = list(concepts.values())
    d_reduced = sum(n - 1 for n in outcomes)                  # = 6
    in_features = 32
    n_vertices = 16                                           # c_layer.n_inputs
    batch = 8

    key = jax.random.PRNGKey(0)
    k_x, k_w, k_b, k_v = jax.random.split(key, 4)

    embeddings = jax.random.normal(k_x, (batch, in_features), dtype=jnp.float32)

    # nn.Linear(in_features, n_vertices) weights, stored transposed as [F, V].
    w = jax.random.normal(k_w, (in_features, n_vertices), dtype=jnp.float32)
    w = w * (1.0 / jnp.sqrt(jnp.float32(in_features)))
    b = 0.01 * jax.random.normal(k_b, (1, n_vertices), dtype=jnp.float32)

    # Polytope vertices in reduced coordinates: per concept, valid probability
    # vectors with the last outcome dropped (reconstructed downstream).
    v_parts = []
    for i, n in enumerate(outcomes):
        full = jax.nn.softmax(
            jax.random.normal(jax.random.fold_in(k_v, i), (n_vertices, n),
                              dtype=jnp.float32), axis=-1)
        v_parts.append(full[:, : n - 1])
    vertices = jnp.concatenate(v_parts, axis=-1)              # [V, d_reduced]

    prepared = prepare_constraints_head_params(w, b, vertices, concepts)

    out = constraints_head_forward(embeddings, prepared, concepts)
    out = jax.tree_util.tree_map(jax.block_until_ready, out)

    ref_bf16 = _reference_forward_bf16(embeddings, w, b, vertices, concepts)
    ref_f32 = _reference_forward_f32(embeddings, w, b, vertices, concepts)
    for name in concepts:
        assert out[name].shape == (batch, concepts[name]), out[name].shape
        # Tight check against a reference emulating the kernel's precision path.
        assert jnp.allclose(out[name], ref_bf16[name], atol=1e-2, rtol=1e-2), name
        # Looser check against the original full-f32 module semantics.
        assert jnp.allclose(out[name], ref_f32[name], atol=3e-2, rtol=3e-2), name

    print("KERNEL_OK")
</pallas_src>

<mosaic_0001>
module attributes {stable_mosaic.version = 11 : i64} {
  func.func @_constraints_head_kernel(%arg0: i32, %arg1: memref<8x32xf32, #tpu.memory_space<vmem>>, %arg2: memref<32x128xbf16, #tpu.memory_space<vmem>>, %arg3: memref<1x128xf32, #tpu.memory_space<vmem>>, %arg4: memref<128x128xbf16, #tpu.memory_space<vmem>>, %arg5: memref<8x128xf32, #tpu.memory_space<vmem>>) attributes {dimension_semantics = [#tpu.dimension_semantics<parallel>], iteration_bounds = array<i64: 1>, scalar_prefetch = 0 : i64, scratch_operands = 0 : i64, tpu.core_type = #tpu.core_type<tc>, window_params = [{transform_indices = @transform_0, window_bounds = array<i64: 8, 32>}, {pipeline_mode = #tpu.pipeline_mode<synchronous>, transform_indices = @transform_1, window_bounds = array<i64: 32, 128>}, {pipeline_mode = #tpu.pipeline_mode<synchronous>, transform_indices = @transform_2, window_bounds = array<i64: 1, 128>}, {pipeline_mode = #tpu.pipeline_mode<synchronous>, transform_indices = @transform_3, window_bounds = array<i64: 128, 128>}, {transform_indices = @transform_4, window_bounds = array<i64: 8, 128>}]} {
    %c0 = arith.constant 0 : index
    %c0_0 = arith.constant 0 : index
    %0 = vector.load %arg1[%c0, %c0_0] : memref<8x32xf32, #tpu.memory_space<vmem>>, vector<8x32xf32>
    %1 = arith.truncf %0 : vector<8x32xf32> to vector<8x32xbf16>
    %c0_1 = arith.constant 0 : index
    %c0_2 = arith.constant 0 : index
    %2 = vector.load %arg2[%c0_1, %c0_2] : memref<32x128xbf16, #tpu.memory_space<vmem>>, vector<32x128xbf16>
    %cst = arith.constant dense<0.000000e+00> : vector<8x128xf32>
    %3 = tpu.matmul %1, %2, %cst {dimension_numbers = #tpu.dot_dimension_numbers<[1], [0], [0], [1], [0, 0, 1, 1], [], []>} : vector<8x32xbf16>, vector<32x128xbf16>, vector<8x128xf32> -> vector<8x128xf32>
    %c0_3 = arith.constant 0 : index
    %c0_4 = arith.constant 0 : index
    %4 = vector.load %arg3[%c0_3, %c0_4] : memref<1x128xf32, #tpu.memory_space<vmem>>, vector<1x128xf32>
    %5 = vector.broadcast %4 : vector<1x128xf32> to vector<8x128xf32>
    %6 = arith.addf %3, %5 : vector<8x128xf32>
    %cst_5 = arith.constant dense<0xFF800000> : vector<8xf32>
    %7 = vector.multi_reduction <maximumf>, %6, %cst_5 [1] : vector<8x128xf32> to vector<8xf32>
    %8 = vector.shape_cast %7 : vector<8xf32> to vector<8x1xf32>
    %9 = vector.broadcast %8 : vector<8x1xf32> to vector<8x128xf32>
    %10 = arith.subf %6, %9 : vector<8x128xf32>
    %11 = math.exp %10 : vector<8x128xf32>
    %cst_6 = arith.constant dense<0.000000e+00> : vector<8xf32>
    %12 = vector.multi_reduction <add>, %11, %cst_6 [1] : vector<8x128xf32> to vector<8xf32>
    %13 = vector.shape_cast %12 : vector<8xf32> to vector<8x1xf32>
    %14 = arith.truncf %11 : vector<8x128xf32> to vector<8x128xbf16>
    %c0_7 = arith.constant 0 : index
    %c0_8 = arith.constant 0 : index
    %15 = vector.load %arg4[%c0_7, %c0_8] : memref<128x128xbf16, #tpu.memory_space<vmem>>, vector<128x128xbf16>
    %cst_9 = arith.constant dense<0.000000e+00> : vector<8x128xf32>
    %16 = tpu.matmul %14, %15, %cst_9 {dimension_numbers = #tpu.dot_dimension_numbers<[1], [0], [0], [1], [0, 0, 1, 1], [], []>} : vector<8x128xbf16>, vector<128x128xbf16>, vector<8x128xf32> -> vector<8x128xf32>
    %17 = tpu.reciprocal %13 {approx = true} : vector<8x1xf32> -> vector<8x1xf32>
    %18 = vector.broadcast %17 : vector<8x1xf32> to vector<8x128xf32>
    %19 = arith.mulf %16, %18 : vector<8x128xf32>
    %c0_10 = arith.constant 0 : index
    %c0_11 = arith.constant 0 : index
    %20 = vector.load %arg5[%c0_10, %c0_11] : memref<8x128xf32, #tpu.memory_space<vmem>>, vector<8x128xf32>
    tpu.vector_store %arg5[%c0_10, %c0_11], %19 {strides = array<i32>} : memref<8x128xf32, #tpu.memory_space<vmem>>, vector<8x128xf32>,
    return
  }
  func.func @transform_0(%arg0: i32) -> (i32, i32) {
    %c0_i32 = arith.constant 0 : i32
    %c0_i32_0 = arith.constant 0 : i32
    return %arg0, %c0_i32 : i32, i32
  }
  func.func @transform_1(%arg0: i32) -> (i32, i32) {
    %c0_i32 = arith.constant 0 : i32
    %c0_i32_0 = arith.constant 0 : i32
    %c0_i32_1 = arith.constant 0 : i32
    return %c0_i32, %c0_i32_0 : i32, i32
  }
  func.func @transform_2(%arg0: i32) -> (i32, i32) {
    %c0_i32 = arith.constant 0 : i32
    %c0_i32_0 = arith.constant 0 : i32
    %c0_i32_1 = arith.constant 0 : i32
    return %c0_i32, %c0_i32_0 : i32, i32
  }
  func.func @transform_3(%arg0: i32) -> (i32, i32) {
    %c0_i32 = arith.constant 0 : i32
    %c0_i32_0 = arith.constant 0 : i32
    %c0_i32_1 = arith.constant 0 : i32
    return %c0_i32, %c0_i32_0 : i32, i32
  }
  func.func @transform_4(%arg0: i32) -> (i32, i32) {
    %c0_i32 = arith.constant 0 : i32
    %c0_i32_0 = arith.constant 0 : i32
    return %arg0, %c0_i32 : i32, i32
  }
}

</mosaic_0001>

<llo_original>
// kernel: tpu_custom_call.1
$region0: #{tpu_custom_call.1}
  #allocation0 [shape = 'u32[]', space=smem, size = 0x4, offset = 0x4, fixed_abs, tag = 'smem constant byte address 0x4 - core index']
  #allocation1 [shape = 'u32[72,128]{1,0:T(1,128)}', space=vmem, size = 0x9000, scoped, tag = 'internal scratch']
  %s0 = inlined_call_operand.hbm [shape: f32[8,32], index: 0, kind: input, shape index: {}]
  %s1 = inlined_call_operand.hbm [shape: bf16[32,128], index: 1, kind: input, shape index: {}]
  %s2 = inlined_call_operand.vmem [shape: f32[1,128], index: 2, kind: input, shape index: {}]
  %s3 = inlined_call_operand.hbm [shape: bf16[128,128], index: 3, kind: input, shape index: {}]
  %s4 = inlined_call_operand.hbm [shape: f32[8,128], index: 4, kind: output, shape index: {}]
  %s5 = sld [smem:[#allocation0]]
  $region38: #{tpu_custom_call.1} parent=0
    _
  %s7 = ssub.s32 1, %s5
  %s8 = scalar_select 0, %s7, %s5
  $region1: #{tpu_custom_call.1} parent=0
    #allocation2 [shape = 'u8[4096]{0}', space=vmem, size = 0x1000, scoped, tag = 'input window, operand 0, single buffered']
    #allocation3 [shape = 's32[1]{0}', space=sflag, size = 0x4, scoped, tag = 'scoped memory for tpu_custom_call.1']
    #allocation4 [shape = 's32[1]{0}', space=sflag, size = 0x4, scoped, tag = 'scoped memory for tpu_custom_call.1']
    #allocation5 [shape = 'u8[8192]{0}', space=vmem, size = 0x2000, scoped, tag = 'input window, operand 1, single buffered']
    #allocation6 [shape = 's32[1]{0}', space=sflag, size = 0x4, scoped, tag = 'scoped memory for tpu_custom_call.1']
    #allocation7 [shape = 'u8[32768]{0}', space=vmem, size = 0x8000, scoped, tag = 'input window, operand 3, single buffered']
    #allocation8 [shape = 'u8[4096]{0}', space=vmem, size = 0x1000, scoped, tag = 'output window, operand 0, single buffered']
    %9 = vsyncpa [#allocation3], 0
    %10 = vsyncpa [#allocation6], 0
    %11 = vsyncpa [#allocation4], 0
    // Predicated region
    $region2: #{tpu_custom_call.1} parent=1 // pred_check
      _
    $region3: #{tpu_custom_call.1} parent=1 // pred_check_branch
      %13 = sbr.rel (0) target = $region5
    $region4: #{tpu_custom_call.1} parent=1 // pred_region
      %15 = vsyncadd [#allocation3], 0
      %s17 = sshll.u32 %s0, 4
      %s18 = int_to_ptr.hbm [resolvable:$true] %s17
      %s19 = sshll.u32 [#allocation2], 4
      %s20 = int_to_ptr.vmem [resolvable:$true] %s19
      %22 = dma.hbm_to_vmem [thread:$0]  %s18, 128, %s20, [#allocation3]
    $region5: #{tpu_custom_call.1} parent=1 // pred_fallthru
      _
    // Predicated region
    $region6: #{tpu_custom_call.1} parent=1 // pred_check
      _
    $region7: #{tpu_custom_call.1} parent=1 // pred_check_branch
      %24 = sbr.rel (0) target = $region9
    $region8: #{tpu_custom_call.1} parent=1 // pred_region
      %26 = vsyncadd [#allocation6], 0
      %s27 = sshll.u32 %s1, 4
      %s28 = int_to_ptr.hbm [resolvable:$true] %s27
      %s29 = sshll.u32 [#allocation5], 4
      %s30 = int_to_ptr.vmem [resolvable:$true] %s29
      %35 = dma.hbm_to_vmem [thread:$0]  %s28, 256, %s30, [#allocation6], 64, 64, 4
    $region9: #{tpu_custom_call.1} parent=1 // pred_fallthru
      _
    // Predicated region
    $region10: #{tpu_custom_call.1} parent=1 // pred_check
      _
    $region11: #{tpu_custom_call.1} parent=1 // pred_check_branch
      %37 = sbr.rel (0) target = $region13
    $region12: #{tpu_custom_call.1} parent=1 // pred_region
      _
    $region13: #{tpu_custom_call.1} parent=1 // pred_fallthru
      _
    // Predicated region
    $region14: #{tpu_custom_call.1} parent=1 // pred_check
      _
    $region15: #{tpu_custom_call.1} parent=1 // pred_check_branch
      %39 = sbr.rel (0) target = $region17
    $region16: #{tpu_custom_call.1} parent=1 // pred_region
      %41 = vsyncadd [#allocation6], 0
      %s42 = sshll.u32 %s3, 4
      %s43 = int_to_ptr.hbm [resolvable:$true] %s42
      %s44 = sshll.u32 [#allocation7], 4
      %s45 = int_to_ptr.vmem [resolvable:$true] %s44
      %50 = dma.hbm_to_vmem [thread:$0]  %s43, 1024, %s45, [#allocation6], 64, 64, 4
    $region17: #{tpu_custom_call.1} parent=1 // pred_fallthru
      _
    // Predicated region
    $region18: #{tpu_custom_call.1} parent=1 // pred_check
      _
    $region19: #{tpu_custom_call.1} parent=1 // pred_check_branch
      %52 = sbr.rel (0) target = $region21
    $region20: #{tpu_custom_call.1} parent=1 // pred_region
      %54 = dma.done [#allocation3], 128
    $region21: #{tpu_custom_call.1} parent=1 // pred_fallthru
      _
    // Predicated region
    $region22: #{tpu_custom_call.1} parent=1 // pred_check
      _
    $region23: #{tpu_custom_call.1} parent=1 // pred_check_branch
      %56 = sbr.rel (0) target = $region25
    $region24: #{tpu_custom_call.1} parent=1 // pred_region
      %58 = dma.done [#allocation6], 256
    $region25: #{tpu_custom_call.1} parent=1 // pred_fallthru
      _
    // Predicated region
    $region26: #{tpu_custom_call.1} parent=1 // pred_check
      _
    $region27: #{tpu_custom_call.1} parent=1 // pred_check_branch
      %60 = sbr.rel (0) target = $region29
    $region28: #{tpu_custom_call.1} parent=1 // pred_region
      %62 = dma.done [#allocation6], 1024
    $region29: #{tpu_custom_call.1} parent=1 // pred_fallthru
      _
    %v64 = vld [vmem:[#allocation2] sm:$0xff]
    %v65 = vpack.c.bf16 %v64, %v64
    %v66 = vld [vmem:[#allocation5] sm:$0xf]
    %v67 = vld [vmem:[#allocation5 + $0x4] sm:$0xf]
    %v68 = vld [vmem:[#allocation5 + $0x8] sm:$0xf]
    %v69 = vld [vmem:[#allocation5 + $0xc] sm:$0xf]
    %v70 = vld [vmem:[%s2] sm:$0x1]
    %v72 = vperm.slane %v70, 0
    %v78 = vunpack.c.l.b16 %v66
    %v79 = vunpack.c.l.b16 %v67
    %v80 = vunpack.c.l.b16 %v68
    %v81 = vunpack.c.l.b16 %v69
    %v82 = vpack.c.b16 %v79, %v78
    %v83 = vpack.c.b16 %v81, %v80
    %vm86 = vcmask 261120
    %v88 = vsel %vm86, %v65, 0
    %90 = vmatpush.bf16.msra.mxu0 0
    %91 = vmatpush.bf16.msra.mxu0 0
    %92 = vmatpush.bf16.msra.mxu0 0
    %93 = vmatpush.bf16.msra.mxu0 0
    %94 = vmatpush.bf16.msra.mxu0 0
    %95 = vmatpush.bf16.msra.mxu0 0
    %96 = vmatpush.bf16.msra.mxu0 %v83
    %97 = vmatpush.bf16.msra.mxu0 %v82
    %98 = vmatmul.bf16.gmra.mxu0 %v88
    %v99 = vpop.f32.mrf.mxu0
    %v100 = vadd.f32 %v72, %v99
    %v101 = vpop.f32.mrf.mxu0
    %102 = vdwg.mxu0
    %103 = vmax.xlane.f32.xlu0 %v100
    %v104 = vpop.xlane.xlu0 %103
    %v105 = vsub.f32 %v100, %v104
    %v106 = vmul.f32 %v105, 1.442695
    %v107 = vpow.pop %v106
    %108 = vadd.xlane.f32.xlu0 %v107
    %v109 = vpop.xlane.xlu0 %108
    %v110 = vpack.c.bf16 %v107, %v107
    %v111 = vld [vmem:[#allocation7] sm:$0xf]
    %v112 = vld [vmem:[#allocation7 + $0x4] sm:$0xf]
    %v113 = vld [vmem:[#allocation7 + $0x8] sm:$0xf]
    %v114 = vld [vmem:[#allocation7 + $0xc] sm:$0xf]
    %v115 = vld [vmem:[#allocation7 + $0x10] sm:$0xf]
    %v116 = vld [vmem:[#allocation7 + $0x14] sm:$0xf]
    %v117 = vld [vmem:[#allocation7 + $0x18] sm:$0xf]
    %v118 = vld [vmem:[#allocation7 + $0x1c] sm:$0xf]
    %v119 = vld [vmem:[#allocation7 + $0x20] sm:$0xf]
    %v120 = vld [vmem:[#allocation7 + $0x24] sm:$0xf]
    %v121 = vld [vmem:[#allocation7 + $0x28] sm:$0xf]
    %v122 = vld [vmem:[#allocation7 + $0x2c] sm:$0xf]
    %v123 = vld [vmem:[#allocation7 + $0x30] sm:$0xf]
    %v124 = vld [vmem:[#allocation7 + $0x34] sm:$0xf]
    %v125 = vld [vmem:[#allocation7 + $0x38] sm:$0xf]
    %v126 = vld [vmem:[#allocation7 + $0x3c] sm:$0xf]
    %v143 = vunpack.c.l.b16 %v111
    %v144 = vunpack.c.l.b16 %v112
    %v145 = vunpack.c.l.b16 %v113
    %v146 = vunpack.c.l.b16 %v114
    %v147 = vunpack.c.l.b16 %v115
    %v148 = vunpack.c.l.b16 %v116
    %v149 = vunpack.c.l.b16 %v117
    %v150 = vunpack.c.l.b16 %v118
    %v151 = vunpack.c.l.b16 %v119
    %v152 = vunpack.c.l.b16 %v120
    %v153 = vunpack.c.l.b16 %v121
    %v154 = vunpack.c.l.b16 %v122
    %v155 = vunpack.c.l.b16 %v123
    %v156 = vunpack.c.l.b16 %v124
    %v157 = vunpack.c.l.b16 %v125
    %v158 = vunpack.c.l.b16 %v126
    %v159 = vpack.c.b16 %v144, %v143
    %v160 = vpack.c.b16 %v146, %v145
    %v161 = vpack.c.b16 %v148, %v147
    %v162 = vpack.c.b16 %v150, %v149
    %v163 = vpack.c.b16 %v152, %v151
    %v164 = vpack.c.b16 %v154, %v153
    %v165 = vpack.c.b16 %v156, %v155
    %v166 = vpack.c.b16 %v158, %v157
    %175 = vmatpush.bf16.msra.mxu0 %v166
    %176 = vmatpush.bf16.msra.mxu0 %v165
    %177 = vmatpush.bf16.msra.mxu0 %v164
    %178 = vmatpush.bf16.msra.mxu0 %v163
    %179 = vmatpush.bf16.msra.mxu0 %v162
    %180 = vmatpush.bf16.msra.mxu0 %v161
    %181 = vmatpush.bf16.msra.mxu0 %v160
    %182 = vmatpush.bf16.msra.mxu0 %v159
    %183 = vmatmul.bf16.gmra.mxu0 %v110
    %v184 = vpop.f32.mrf.mxu0
    %v185 = vadd.f32 0.0, %v184
    %v186 = vpop.f32.mrf.mxu0
    %187 = vdwg.mxu0
    %v188 = vrcp.pop %v109
    %v189 = vmul.f32 %v185, %v188
    %190 = vst [vmem:[#allocation8] sm:$0xff] %v189
    // Predicated region
    $region30: #{tpu_custom_call.1} parent=1 // pred_check
      _
    $region31: #{tpu_custom_call.1} parent=1 // pred_check_branch
      %192 = sbr.rel (0) target = $region33
    $region32: #{tpu_custom_call.1} parent=1 // pred_region
      %194 = vsyncadd [#allocation4], 0
      %s196 = sshll.u32 [#allocation8], 4
      %s197 = int_to_ptr.vmem [resolvable:$true] %s196
      %s198 = sshll.u32 %s4, 4
      %s199 = int_to_ptr.hbm [resolvable:$true] %s198
      %201 = dma.vmem_to_hbm [thread:$0]  %s197, 128, %s199, [#allocation4]
    $region33: #{tpu_custom_call.1} parent=1 // pred_fallthru
      _
    // Predicated region
    $region34: #{tpu_custom_call.1} parent=1 // pred_check
      _
    $region35: #{tpu_custom_call.1} parent=1 // pred_check_branch
      %203 = sbr.rel (0) target = $region37
    $region36: #{tpu_custom_call.1} parent=1 // pred_region
      %205 = dma.done [#allocation4], 128
    $region37: #{tpu_custom_call.1} parent=1 // pred_fallthru
      _
    %206 = vsyncpa [#allocation3], 1
    %207 = vsyncpa [#allocation6], 1
    %208 = vsyncpa [#allocation4], 1

</llo_original>
